<compile_context>
chip_gen: v7x
topology: tpu7x:2x2x1
jax: 0.10.0
libtpu: 0.0.40
codegen_flags: <defaults>
</compile_context>

<pallas_src>
import jax
import jax.numpy as jnp
from jax.experimental import pallas as pl
from jax.experimental.pallas import tpu as pltpu

LANE = 128     # lane width: last dim of every block is a multiple of this
SUBLANE = 8    # f32 sublane width: second-to-last dim multiple


def _round_up(x, m):
    return ((x + m - 1) // m) * m


def ae_kernel(x_ref,
              w1_ref, b1_ref, w2_ref, b2_ref, wz_ref, bz_ref,
              w4_ref, b4_ref, w5_ref, b5_ref, wx_ref, bx_ref,
              xbar_ref, z_ref):
    """Fused 6-layer MLP: enc1 -> enc2 -> z -> dec1 -> dec2 -> x_bar."""
    x = x_ref[...]

    def dense(h, w_ref, b_ref, relu):
        # Matmul operands in the weight dtype (bf16 fast MXU path on all
        # generations), f32 accumulation on the MXU, f32 bias add / ReLU
        # on the VPU.
        y = jnp.dot(h.astype(w_ref.dtype), w_ref[...],
                    preferred_element_type=jnp.float32) + b_ref[...]
        return jnp.maximum(y, 0.0) if relu else y

    h1 = dense(x, w1_ref, b1_ref, True)        # enc_1 + relu
    h2 = dense(h1, w2_ref, b2_ref, True)       # enc_2 + relu
    z = dense(h2, wz_ref, bz_ref, False)       # z_layer
    d1 = dense(z, w4_ref, b4_ref, True)        # dec_1 + relu
    d2 = dense(d1, w5_ref, b5_ref, True)       # dec_2 + relu
    x_bar = dense(d2, wx_ref, bx_ref, False)   # x_bar_layer

    xbar_ref[...] = x_bar.astype(xbar_ref.dtype)
    z_ref[...] = z.astype(z_ref.dtype)


def _choose_tile_m(batch):
    """Single grid step for small/medium batches; 512-row tiles for large ones.

    Per-grid-step overhead is ~600 cycles, so tiny tiles are pure overhead.
    VMEM is not a constraint here (weights ~0.2-0.4 MiB resident; a 1024-row
    f32 activation slab is 0.5 MiB), so prefer the biggest single tile up to
    1024 rows; beyond that use 512-row parallel tiles (each fills the MXU M
    rows and the parallel axis can shard across v7x TensorCores).
    """
    b_al = max(SUBLANE, _round_up(batch, SUBLANE))
    if b_al <= 1024:
        return b_al
    return 512


def make_ae_forward(params, *, compute_dtype=jnp.bfloat16):
    """Pad/convert parameters once and return a jitted forward: x -> (x_bar, z).

    params: list of 6 (W, b) pairs with W of shape (in_features, out_features).
    compute_dtype: matmul-operand dtype (bf16 default = fast MXU path on
    v5e/v6e/v7x; float32 for an exact path).  Accumulation/bias/ReLU are f32.
    """
    dims = [params[0][0].shape[0]] + [w.shape[1] for (w, _) in params]
    dims_p = [_round_up(d, LANE) for d in dims]
    n_input, n_z = dims[0], dims[3]
    n_input_p, n_z_p = dims_p[0], dims_p[3]

    # Pad weights/biases ONCE (zero rows/cols + zero bias lanes are inert).
    wb_flat = []
    for li, (w, b) in enumerate(params):
        in_p, out_p = dims_p[li], dims_p[li + 1]
        w_p = jnp.zeros((in_p, out_p), compute_dtype)
        w_p = w_p.at[:w.shape[0], :w.shape[1]].set(w.astype(compute_dtype))
        b_p = jnp.zeros((1, out_p), jnp.float32)
        b_p = b_p.at[0, :b.shape[0]].set(b.astype(jnp.float32))
        wb_flat += [w_p, b_p]
    wb_flat = tuple(wb_flat)

    # Whole-array VMEM residency for the (tiny, grid-invariant) weights/biases:
    # one copy in VMEM, no per-step double-buffering DMAs.
    wb_specs = [pl.BlockSpec(memory_space=pltpu.MemorySpace.VMEM)
                for _ in wb_flat]

    @jax.jit
    def forward(x):
        B = x.shape[0]
        tile_m = _choose_tile_m(B)
        B_pad = _round_up(B, tile_m)
        grid = (B_pad // tile_m,)

        # Lane-align input (padding rows/lanes are zero; sliced away below).
        x_p = jnp.zeros((B_pad, n_input_p), compute_dtype)
        x_p = x_p.at[:B, :n_input].set(x.astype(compute_dtype))

        out_shapes = (jax.ShapeDtypeStruct((B_pad, n_input_p), jnp.float32),
                      jax.ShapeDtypeStruct((B_pad, n_z_p), jnp.float32))

        xbar_p, z_p = pl.pallas_call(
            ae_kernel,
            out_shape=out_shapes,
            grid_spec=pltpu.PrefetchScalarGridSpec(
                num_scalar_prefetch=0,
                grid=grid,
                in_specs=[pl.BlockSpec((tile_m, n_input_p),
                                       lambda i: (i, 0))] + wb_specs,
                out_specs=[pl.BlockSpec((tile_m, n_input_p), lambda i: (i, 0)),
                           pl.BlockSpec((tile_m, n_z_p), lambda i: (i, 0))],
            ),
            compiler_params=pltpu.CompilerParams(
                dimension_semantics=("parallel",)),
        )(x_p, *wb_flat)

        # Under jit these slices fuse with the kernel epilogue / consumers.
        return xbar_p[:B, :n_input], z_p[:B, :n_z]

    return forward


def ae_forward(x, params, *, compute_dtype=jnp.bfloat16):
    """Convenience wrapper: build (pads weights) and call in one go."""
    return make_ae_forward(params, compute_dtype=compute_dtype)(x)


def make_params(key, n_enc_1, n_enc_2, n_dec_1, n_dec_2, n_input, n_z):
    """Deterministic synthetic parameters.  Each entry: (W (in,out), b (out,))."""
    dims = [(n_input, n_enc_1),   # enc_1
            (n_enc_1, n_enc_2),   # enc_2
            (n_enc_2, n_z),       # z_layer
            (n_z, n_dec_1),       # dec_1
            (n_dec_1, n_dec_2),   # dec_2
            (n_dec_2, n_input)]   # x_bar_layer
    params = []
    for (fan_in, fan_out) in dims:
        key, kw, kb = jax.random.split(key, 3)
        bound = 1.0 / jnp.sqrt(fan_in)
        w = jax.random.uniform(kw, (fan_in, fan_out), jnp.float32, -bound, bound)
        b = jax.random.uniform(kb, (fan_out,), jnp.float32, -bound, bound)
        params.append((w, b))
    return params


def ae_reference(x, params):
    """Plain-JAX reference of the PyTorch forward."""
    (w1, b1), (w2, b2), (wz, bz), (w4, b4), (w5, b5), (wx, bx) = params
    h1 = jnp.maximum(x @ w1 + b1, 0.0)
    h2 = jnp.maximum(h1 @ w2 + b2, 0.0)
    z = h2 @ wz + bz
    d1 = jnp.maximum(z @ w4 + b4, 0.0)
    d2 = jnp.maximum(d1 @ w5 + b5, 0.0)
    x_bar = d2 @ wx + bx
    return x_bar, z


if __name__ == "__main__":
    # Small shapes consistent with the module's forward.
    n_input = 32
    n_enc_1, n_enc_2 = 64, 48
    n_z = 16
    n_dec_1, n_dec_2 = 48, 64

    key = jax.random.PRNGKey(0)
    key, kx = jax.random.split(key)
    params = make_params(key, n_enc_1, n_enc_2, n_dec_1, n_dec_2, n_input, n_z)

    batch = 16
    x = jax.random.normal(kx, (batch, n_input), jnp.float32)
    x_bar_ref, z_ref = ae_reference(x, params)

    # 1) Default bf16-operand path (fast MXU on v5e/v6e/v7x), f32 accumulation.
    fwd_bf16 = make_ae_forward(params)                     # single grid step here
    x_bar, z = fwd_bf16(x)
    jax.block_until_ready((x_bar, z))
    assert x_bar.shape == (batch, n_input) and z.shape == (batch, n_z)
    assert jnp.allclose(x_bar, x_bar_ref, atol=1e-1, rtol=1e-1)
    assert jnp.allclose(z, z_ref, atol=1e-1, rtol=1e-1)

    # 2) Exact f32 path: tight-tolerance correctness check.
    fwd_f32 = make_ae_forward(params, compute_dtype=jnp.float32)
    x_bar32, z32 = fwd_f32(x)
    jax.block_until_ready((x_bar32, z32))
    assert jnp.allclose(x_bar32, x_bar_ref, atol=1e-5, rtol=1e-5)
    assert jnp.allclose(z32, z_ref, atol=1e-5, rtol=1e-5)

    # 3) Ragged batch (not a sublane multiple): exercises the pad + slice path.
    key, kx2 = jax.random.split(key)
    batch2 = 52
    x2 = jax.random.normal(kx2, (batch2, n_input), jnp.float32)
    x_bar2, z2 = fwd_f32(x2)
    jax.block_until_ready((x_bar2, z2))
    x_bar2_ref, z2_ref = ae_reference(x2, params)
    assert jnp.allclose(x_bar2, x_bar2_ref, atol=1e-5, rtol=1e-5)
    assert jnp.allclose(z2, z2_ref, atol=1e-5, rtol=1e-5)

    # 4) Larger batch: exercises the multi-tile (grid > 1, 512-row) path.
    key, kx3 = jax.random.split(key)
    batch3 = 1280
    x3 = jax.random.normal(kx3, (batch3, n_input), jnp.float32)
    x_bar3, z3 = fwd_bf16(x3)
    jax.block_until_ready((x_bar3, z3))
    x_bar3_ref, z3_ref = ae_reference(x3, params)
    assert jnp.allclose(x_bar3, x_bar3_ref, atol=1e-1, rtol=1e-1)
    assert jnp.allclose(z3, z3_ref, atol=1e-1, rtol=1e-1)

    print("KERNEL_OK")
</pallas_src>

<mosaic_0001>
module attributes {stable_mosaic.version = 11 : i64} {
  func.func @ae_kernel(%arg0: i32, %arg1: memref<16x128xbf16, #tpu.memory_space<vmem>>, %arg2: memref<128x128xbf16, #tpu.memory_space<vmem>>, %arg3: memref<1x128xf32, #tpu.memory_space<vmem>>, %arg4: memref<128x128xbf16, #tpu.memory_space<vmem>>, %arg5: memref<1x128xf32, #tpu.memory_space<vmem>>, %arg6: memref<128x128xbf16, #tpu.memory_space<vmem>>, %arg7: memref<1x128xf32, #tpu.memory_space<vmem>>, %arg8: memref<128x128xbf16, #tpu.memory_space<vmem>>, %arg9: memref<1x128xf32, #tpu.memory_space<vmem>>, %arg10: memref<128x128xbf16, #tpu.memory_space<vmem>>, %arg11: memref<1x128xf32, #tpu.memory_space<vmem>>, %arg12: memref<128x128xbf16, #tpu.memory_space<vmem>>, %arg13: memref<1x128xf32, #tpu.memory_space<vmem>>, %arg14: memref<16x128xf32, #tpu.memory_space<vmem>>, %arg15: memref<16x128xf32, #tpu.memory_space<vmem>>) attributes {dimension_semantics = [#tpu.dimension_semantics<parallel>], iteration_bounds = array<i64: 1>, scalar_prefetch = 0 : i64, scratch_operands = 0 : i64, tpu.core_type = #tpu.core_type<tc>, window_params = [{transform_indices = @transform_0, window_bounds = array<i64: 16, 128>}, {pipeline_mode = #tpu.pipeline_mode<synchronous>, transform_indices = @transform_1, window_bounds = array<i64: 128, 128>}, {pipeline_mode = #tpu.pipeline_mode<synchronous>, transform_indices = @transform_2, window_bounds = array<i64: 1, 128>}, {pipeline_mode = #tpu.pipeline_mode<synchronous>, transform_indices = @transform_3, window_bounds = array<i64: 128, 128>}, {pipeline_mode = #tpu.pipeline_mode<synchronous>, transform_indices = @transform_4, window_bounds = array<i64: 1, 128>}, {pipeline_mode = #tpu.pipeline_mode<synchronous>, transform_indices = @transform_5, window_bounds = array<i64: 128, 128>}, {pipeline_mode = #tpu.pipeline_mode<synchronous>, transform_indices = @transform_6, window_bounds = array<i64: 1, 128>}, {pipeline_mode = #tpu.pipeline_mode<synchronous>, transform_indices = @transform_7, window_bounds = array<i64: 128, 128>}, {pipeline_mode = #tpu.pipeline_mode<synchronous>, transform_indices = @transform_8, window_bounds = array<i64: 1, 128>}, {pipeline_mode = #tpu.pipeline_mode<synchronous>, transform_indices = @transform_9, window_bounds = array<i64: 128, 128>}, {pipeline_mode = #tpu.pipeline_mode<synchronous>, transform_indices = @transform_10, window_bounds = array<i64: 1, 128>}, {pipeline_mode = #tpu.pipeline_mode<synchronous>, transform_indices = @transform_11, window_bounds = array<i64: 128, 128>}, {pipeline_mode = #tpu.pipeline_mode<synchronous>, transform_indices = @transform_12, window_bounds = array<i64: 1, 128>}, {transform_indices = @transform_13, window_bounds = array<i64: 16, 128>}, {transform_indices = @transform_14, window_bounds = array<i64: 16, 128>}]} {
    %c0 = arith.constant 0 : index
    %c0_0 = arith.constant 0 : index
    %0 = vector.load %arg1[%c0, %c0_0] : memref<16x128xbf16, #tpu.memory_space<vmem>>, vector<16x128xbf16>
    %c0_1 = arith.constant 0 : index
    %c0_2 = arith.constant 0 : index
    %1 = vector.load %arg2[%c0_1, %c0_2] : memref<128x128xbf16, #tpu.memory_space<vmem>>, vector<128x128xbf16>
    %cst = arith.constant dense<0.000000e+00> : vector<16x128xf32>
    %2 = tpu.matmul %0, %1, %cst {dimension_numbers = #tpu.dot_dimension_numbers<[1], [0], [0], [1], [0, 0, 1, 1], [], []>} : vector<16x128xbf16>, vector<128x128xbf16>, vector<16x128xf32> -> vector<16x128xf32>
    %c0_3 = arith.constant 0 : index
    %c0_4 = arith.constant 0 : index
    %3 = vector.load %arg3[%c0_3, %c0_4] : memref<1x128xf32, #tpu.memory_space<vmem>>, vector<1x128xf32>
    %4 = vector.broadcast %3 : vector<1x128xf32> to vector<16x128xf32>
    %5 = arith.addf %2, %4 : vector<16x128xf32>
    %cst_5 = arith.constant 0.000000e+00 : f32
    %6 = vector.broadcast %cst_5 : f32 to vector<16x128xf32>
    %7 = arith.maximumf %5, %6 : vector<16x128xf32>
    %8 = arith.truncf %7 : vector<16x128xf32> to vector<16x128xbf16>
    %c0_6 = arith.constant 0 : index
    %c0_7 = arith.constant 0 : index
    %9 = vector.load %arg4[%c0_6, %c0_7] : memref<128x128xbf16, #tpu.memory_space<vmem>>, vector<128x128xbf16>
    %cst_8 = arith.constant dense<0.000000e+00> : vector<16x128xf32>
    %10 = tpu.matmul %8, %9, %cst_8 {dimension_numbers = #tpu.dot_dimension_numbers<[1], [0], [0], [1], [0, 0, 1, 1], [], []>} : vector<16x128xbf16>, vector<128x128xbf16>, vector<16x128xf32> -> vector<16x128xf32>
    %c0_9 = arith.constant 0 : index
    %c0_10 = arith.constant 0 : index
    %11 = vector.load %arg5[%c0_9, %c0_10] : memref<1x128xf32, #tpu.memory_space<vmem>>, vector<1x128xf32>
    %12 = vector.broadcast %11 : vector<1x128xf32> to vector<16x128xf32>
    %13 = arith.addf %10, %12 : vector<16x128xf32>
    %cst_11 = arith.constant 0.000000e+00 : f32
    %14 = vector.broadcast %cst_11 : f32 to vector<16x128xf32>
    %15 = arith.maximumf %13, %14 : vector<16x128xf32>
    %16 = arith.truncf %15 : vector<16x128xf32> to vector<16x128xbf16>
    %c0_12 = arith.constant 0 : index
    %c0_13 = arith.constant 0 : index
    %17 = vector.load %arg6[%c0_12, %c0_13] : memref<128x128xbf16, #tpu.memory_space<vmem>>, vector<128x128xbf16>
    %cst_14 = arith.constant dense<0.000000e+00> : vector<16x128xf32>
    %18 = tpu.matmul %16, %17, %cst_14 {dimension_numbers = #tpu.dot_dimension_numbers<[1], [0], [0], [1], [0, 0, 1, 1], [], []>} : vector<16x128xbf16>, vector<128x128xbf16>, vector<16x128xf32> -> vector<16x128xf32>
    %c0_15 = arith.constant 0 : index
    %c0_16 = arith.constant 0 : index
    %19 = vector.load %arg7[%c0_15, %c0_16] : memref<1x128xf32, #tpu.memory_space<vmem>>, vector<1x128xf32>
    %20 = vector.broadcast %19 : vector<1x128xf32> to vector<16x128xf32>
    %21 = arith.addf %18, %20 : vector<16x128xf32>
    %22 = arith.truncf %21 : vector<16x128xf32> to vector<16x128xbf16>
    %c0_17 = arith.constant 0 : index
    %c0_18 = arith.constant 0 : index
    %23 = vector.load %arg8[%c0_17, %c0_18] : memref<128x128xbf16, #tpu.memory_space<vmem>>, vector<128x128xbf16>
    %cst_19 = arith.constant dense<0.000000e+00> : vector<16x128xf32>
    %24 = tpu.matmul %22, %23, %cst_19 {dimension_numbers = #tpu.dot_dimension_numbers<[1], [0], [0], [1], [0, 0, 1, 1], [], []>} : vector<16x128xbf16>, vector<128x128xbf16>, vector<16x128xf32> -> vector<16x128xf32>
    %c0_20 = arith.constant 0 : index
    %c0_21 = arith.constant 0 : index
    %25 = vector.load %arg9[%c0_20, %c0_21] : memref<1x128xf32, #tpu.memory_space<vmem>>, vector<1x128xf32>
    %26 = vector.broadcast %25 : vector<1x128xf32> to vector<16x128xf32>
    %27 = arith.addf %24, %26 : vector<16x128xf32>
    %cst_22 = arith.constant 0.000000e+00 : f32
    %28 = vector.broadcast %cst_22 : f32 to vector<16x128xf32>
    %29 = arith.maximumf %27, %28 : vector<16x128xf32>
    %30 = arith.truncf %29 : vector<16x128xf32> to vector<16x128xbf16>
    %c0_23 = arith.constant 0 : index
    %c0_24 = arith.constant 0 : index
    %31 = vector.load %arg10[%c0_23, %c0_24] : memref<128x128xbf16, #tpu.memory_space<vmem>>, vector<128x128xbf16>
    %cst_25 = arith.constant dense<0.000000e+00> : vector<16x128xf32>
    %32 = tpu.matmul %30, %31, %cst_25 {dimension_numbers = #tpu.dot_dimension_numbers<[1], [0], [0], [1], [0, 0, 1, 1], [], []>} : vector<16x128xbf16>, vector<128x128xbf16>, vector<16x128xf32> -> vector<16x128xf32>
    %c0_26 = arith.constant 0 : index
    %c0_27 = arith.constant 0 : index
    %33 = vector.load %arg11[%c0_26, %c0_27] : memref<1x128xf32, #tpu.memory_space<vmem>>, vector<1x128xf32>
    %34 = vector.broadcast %33 : vector<1x128xf32> to vector<16x128xf32>
    %35 = arith.addf %32, %34 : vector<16x128xf32>
    %cst_28 = arith.constant 0.000000e+00 : f32
    %36 = vector.broadcast %cst_28 : f32 to vector<16x128xf32>
    %37 = arith.maximumf %35, %36 : vector<16x128xf32>
    %38 = arith.truncf %37 : vector<16x128xf32> to vector<16x128xbf16>
    %c0_29 = arith.constant 0 : index
    %c0_30 = arith.constant 0 : index
    %39 = vector.load %arg12[%c0_29, %c0_30] : memref<128x128xbf16, #tpu.memory_space<vmem>>, vector<128x128xbf16>
    %cst_31 = arith.constant dense<0.000000e+00> : vector<16x128xf32>
    %40 = tpu.matmul %38, %39, %cst_31 {dimension_numbers = #tpu.dot_dimension_numbers<[1], [0], [0], [1], [0, 0, 1, 1], [], []>} : vector<16x128xbf16>, vector<128x128xbf16>, vector<16x128xf32> -> vector<16x128xf32>
    %c0_32 = arith.constant 0 : index
    %c0_33 = arith.constant 0 : index
    %41 = vector.load %arg13[%c0_32, %c0_33] : memref<1x128xf32, #tpu.memory_space<vmem>>, vector<1x128xf32>
    %42 = vector.broadcast %41 : vector<1x128xf32> to vector<16x128xf32>
    %43 = arith.addf %40, %42 : vector<16x128xf32>
    %c0_34 = arith.constant 0 : index
    %c0_35 = arith.constant 0 : index
    %44 = vector.load %arg14[%c0_34, %c0_35] : memref<16x128xf32, #tpu.memory_space<vmem>>, vector<16x128xf32>
    tpu.vector_store %arg14[%c0_34, %c0_35], %43 {strides = array<i32>} : memref<16x128xf32, #tpu.memory_space<vmem>>, vector<16x128xf32>,
    %c0_36 = arith.constant 0 : index
    %c0_37 = arith.constant 0 : index
    %45 = vector.load %arg15[%c0_36, %c0_37] : memref<16x128xf32, #tpu.memory_space<vmem>>, vector<16x128xf32>
    tpu.vector_store %arg15[%c0_36, %c0_37], %21 {strides = array<i32>} : memref<16x128xf32, #tpu.memory_space<vmem>>, vector<16x128xf32>,
    return
  }
  func.func @transform_0(%arg0: i32) -> (i32, i32) {
    %c0_i32 = arith.constant 0 : i32
    %c0_i32_0 = arith.constant 0 : i32
    return %arg0, %c0_i32 : i32, i32
  }
  func.func @transform_1(%arg0: i32) -> (i32, i32) {
    %c0_i32 = arith.constant 0 : i32
    %c0_i32_0 = arith.constant 0 : i32
    %c0_i32_1 = arith.constant 0 : i32
    return %c0_i32, %c0_i32_0 : i32, i32
  }
  func.func @transform_2(%arg0: i32) -> (i32, i32) {
    %c0_i32 = arith.constant 0 : i32
    %c0_i32_0 = arith.constant 0 : i32
    %c0_i32_1 = arith.constant 0 : i32
    return %c0_i32, %c0_i32_0 : i32, i32
  }
  func.func @transform_3(%arg0: i32) -> (i32, i32) {
    %c0_i32 = arith.constant 0 : i32
    %c0_i32_0 = arith.constant 0 : i32
    %c0_i32_1 = arith.constant 0 : i32
    return %c0_i32, %c0_i32_0 : i32, i32
  }
  func.func @transform_4(%arg0: i32) -> (i32, i32) {
    %c0_i32 = arith.constant 0 : i32
    %c0_i32_0 = arith.constant 0 : i32
    %c0_i32_1 = arith.constant 0 : i32
    return %c0_i32, %c0_i32_0 : i32, i32
  }
  func.func @transform_5(%arg0: i32) -> (i32, i32) {
    %c0_i32 = arith.constant 0 : i32
    %c0_i32_0 = arith.constant 0 : i32
    %c0_i32_1 = arith.constant 0 : i32
    return %c0_i32, %c0_i32_0 : i32, i32
  }
  func.func @transform_6(%arg0: i32) -> (i32, i32) {
    %c0_i32 = arith.constant 0 : i32
    %c0_i32_0 = arith.constant 0 : i32
    %c0_i32_1 = arith.constant 0 : i32
    return %c0_i32, %c0_i32_0 : i32, i32
  }
  func.func @transform_7(%arg0: i32) -> (i32, i32) {
    %c0_i32 = arith.constant 0 : i32
    %c0_i32_0 = arith.constant 0 : i32
    %c0_i32_1 = arith.constant 0 : i32
    return %c0_i32, %c0_i32_0 : i32, i32
  }
  func.func @transform_8(%arg0: i32) -> (i32, i32) {
    %c0_i32 = arith.constant 0 : i32
    %c0_i32_0 = arith.constant 0 : i32
    %c0_i32_1 = arith.constant 0 : i32
    return %c0_i32, %c0_i32_0 : i32, i32
  }
  func.func @transform_9(%arg0: i32) -> (i32, i32) {
    %c0_i32 = arith.constant 0 : i32
    %c0_i32_0 = arith.constant 0 : i32
    %c0_i32_1 = arith.constant 0 : i32
    return %c0_i32, %c0_i32_0 : i32, i32
  }
  func.func @transform_10(%arg0: i32) -> (i32, i32) {
    %c0_i32 = arith.constant 0 : i32
    %c0_i32_0 = arith.constant 0 : i32
    %c0_i32_1 = arith.constant 0 : i32
    return %c0_i32, %c0_i32_0 : i32, i32
  }
  func.func @transform_11(%arg0: i32) -> (i32, i32) {
    %c0_i32 = arith.constant 0 : i32
    %c0_i32_0 = arith.constant 0 : i32
    %c0_i32_1 = arith.constant 0 : i32
    return %c0_i32, %c0_i32_0 : i32, i32
  }
  func.func @transform_12(%arg0: i32) -> (i32, i32) {
    %c0_i32 = arith.constant 0 : i32
    %c0_i32_0 = arith.constant 0 : i32
    %c0_i32_1 = arith.constant 0 : i32
    return %c0_i32, %c0_i32_0 : i32, i32
  }
  func.func @transform_13(%arg0: i32) -> (i32, i32) {
    %c0_i32 = arith.constant 0 : i32
    %c0_i32_0 = arith.constant 0 : i32
    return %arg0, %c0_i32 : i32, i32
  }
  func.func @transform_14(%arg0: i32) -> (i32, i32) {
    %c0_i32 = arith.constant 0 : i32
    %c0_i32_0 = arith.constant 0 : i32
    return %arg0, %c0_i32 : i32, i32
  }
}

</mosaic_0001>

<llo_original>
// kernel: forward.1
$region0: #{forward.1}
  #allocation0 [shape = 'u32[]', space=smem, size = 0x4, offset = 0x4, fixed_abs, tag = 'smem constant byte address 0x4 - core index']
  #allocation1 [shape = 'u32[144,128]{1,0:T(1,128)}', space=vmem, size = 0x12000, scoped, tag = 'internal scratch']
  %s0 = inlined_call_operand.vmem [shape: bf16[16,128], index: 0, kind: input, shape index: {}]
  %s1 = inlined_call_operand.hbm [shape: bf16[128,128], index: 1, kind: input, shape index: {}]
  %s2 = inlined_call_operand.vmem [shape: f32[1,128], index: 2, kind: input, shape index: {}]
  %s3 = inlined_call_operand.hbm [shape: bf16[128,128], index: 3, kind: input, shape index: {}]
  %s4 = inlined_call_operand.vmem [shape: f32[1,128], index: 4, kind: input, shape index: {}]
  %s5 = inlined_call_operand.hbm [shape: bf16[128,128], index: 5, kind: input, shape index: {}]
  %s6 = inlined_call_operand.vmem [shape: f32[1,128], index: 6, kind: input, shape index: {}]
  %s7 = inlined_call_operand.hbm [shape: bf16[128,128], index: 7, kind: input, shape index: {}]
  %s8 = inlined_call_operand.vmem [shape: f32[1,128], index: 8, kind: input, shape index: {}]
  %s9 = inlined_call_operand.hbm [shape: bf16[128,128], index: 9, kind: input, shape index: {}]
  %s10 = inlined_call_operand.vmem [shape: f32[1,128], index: 10, kind: input, shape index: {}]
  %s11 = inlined_call_operand.vmem [shape: bf16[128,128], index: 11, kind: input, shape index: {}]
  %s12 = inlined_call_operand.vmem [shape: f32[1,128], index: 12, kind: input, shape index: {}]
  %s13 = inlined_call_operand.hbm [shape: f32[16,128], index: 13, kind: output, shape index: {0}]
  %s14 = inlined_call_operand.hbm [shape: f32[16,128], index: 14, kind: output, shape index: {1}]
  %15 = xla_tuple %s13, %s14
  %s16 = sld [smem:[#allocation0]]
  $region90: #{forward.1} parent=0
    _
  %s18 = ssub.s32 1, %s16
  %s19 = scalar_select 0, %s18, %s16
  $region1: #{forward.1} parent=0
    #allocation2 [shape = 'u8[32768]{0}', space=vmem, size = 0x8000, scoped, tag = 'input window, operand 1, single buffered']
    #allocation3 [shape = 's32[1]{0}', space=sflag, size = 0x4, scoped, tag = 'scoped memory for forward.1']
    #allocation4 [shape = 's32[1]{0}', space=sflag, size = 0x4, scoped, tag = 'scoped memory for forward.1']
    #allocation5 [shape = 'u8[32768]{0}', space=vmem, size = 0x8000, scoped, tag = 'input window, operand 3, single buffered']
    #allocation6 [shape = 's32[1]{0}', space=sflag, size = 0x4, scoped, tag = 'scoped memory for forward.1']
    #allocation7 [shape = 'u8[32768]{0}', space=vmem, size = 0x8000, scoped, tag = 'input window, operand 5, single buffered']
    #allocation8 [shape = 'u8[32768]{0}', space=vmem, size = 0x8000, scoped, tag = 'input window, operand 7, single buffered']
    #allocation9 [shape = 's32[1]{0}', space=sflag, size = 0x4, scoped, tag = 'scoped memory for forward.1']
    #allocation10 [shape = 'u8[32768]{0}', space=vmem, size = 0x8000, scoped, tag = 'input window, operand 9, single buffered']
    #allocation11 [shape = 'u8[8192]{0}', space=vmem, size = 0x2000, scoped, tag = 'output window, operand 0, single buffered']
    #allocation12 [shape = 'u8[8192]{0}', space=vmem, size = 0x2000, scoped, tag = 'output window, operand 1, single buffered']
    #allocation13 [shape = 's32[1]{0}', space=sflag, size = 0x4, scoped, tag = 'scoped memory for forward.1']
    %20 = vsyncpa [#allocation3], 0
    %21 = vsyncpa [#allocation6], 0
    %22 = vsyncpa [#allocation9], 0
    %23 = vsyncpa [#allocation4], 0
    %24 = vsyncpa [#allocation13], 0
    // Predicated region
    $region2: #{forward.1} parent=1 // pred_check
      _
    $region3: #{forward.1} parent=1 // pred_check_branch
      %26 = sbr.rel (0) target = $region5
    $region4: #{forward.1} parent=1 // pred_region
      _
    $region5: #{forward.1} parent=1 // pred_fallthru
      _
    // Predicated region
    $region6: #{forward.1} parent=1 // pred_check
      _
    $region7: #{forward.1} parent=1 // pred_check_branch
      %28 = sbr.rel (0) target = $region9
    $region8: #{forward.1} parent=1 // pred_region
      %s30 = ssub.s32 1024, 1024
      %31 = vsyncadd [#allocation3], %s30
      %s32 = sshll.u32 [#allocation2], 4
      %s33 = int_to_ptr.vmem [resolvable:$true] %s32
      %38 = dma.hbm_to_vmem [thread:$0]  %s1, 1024, %s33, [#allocation3], 64, 64, 4
    $region9: #{forward.1} parent=1 // pred_fallthru
      _
    // Predicated region
    $region10: #{forward.1} parent=1 // pred_check
      _
    $region11: #{forward.1} parent=1 // pred_check_branch
      %40 = sbr.rel (0) target = $region13
    $region12: #{forward.1} parent=1 // pred_region
      _
    $region13: #{forward.1} parent=1 // pred_fallthru
      _
    // Predicated region
    $region14: #{forward.1} parent=1 // pred_check
      _
    $region15: #{forward.1} parent=1 // pred_check_branch
      %42 = sbr.rel (0) target = $region17
    $region16: #{forward.1} parent=1 // pred_region
      %s44 = ssub.s32 1024, 1024
      %45 = vsyncadd [#allocation6], %s44
      %s46 = sshll.u32 [#allocation5], 4
      %s47 = int_to_ptr.vmem [resolvable:$true] %s46
      %52 = dma.hbm_to_vmem [thread:$0]  %s3, 1024, %s47, [#allocation6], 64, 64, 4
    $region17: #{forward.1} parent=1 // pred_fallthru
      _
    // Predicated region
    $region18: #{forward.1} parent=1 // pred_check
      _
    $region19: #{forward.1} parent=1 // pred_check_branch
      %54 = sbr.rel (0) target = $region21
    $region20: #{forward.1} parent=1 // pred_region
      _
    $region21: #{forward.1} parent=1 // pred_fallthru
      _
    // Predicated region
    $region22: #{forward.1} parent=1 // pred_check
      _
    $region23: #{forward.1} parent=1 // pred_check_branch
      %56 = sbr.rel (0) target = $region25
    $region24: #{forward.1} parent=1 // pred_region
      %s58 = ssub.s32 1024, 1024
      %59 = vsyncadd [#allocation6], %s58
      %s60 = sshll.u32 [#allocation7], 4
      %s61 = int_to_ptr.vmem [resolvable:$true] %s60
      %66 = dma.hbm_to_vmem [thread:$0]  %s5, 1024, %s61, [#allocation6], 64, 64, 4
    $region25: #{forward.1} parent=1 // pred_fallthru
      _
    // Predicated region
    $region26: #{forward.1} parent=1 // pred_check
      _
    $region27: #{forward.1} parent=1 // pred_check_branch
      %68 = sbr.rel (0) target = $region29
    $region28: #{forward.1} parent=1 // pred_region
      _
    $region29: #{forward.1} parent=1 // pred_fallthru
      _
    // Predicated region
    $region30: #{forward.1} parent=1 // pred_check
      _
    $region31: #{forward.1} parent=1 // pred_check_branch
      %70 = sbr.rel (0) target = $region33
    $region32: #{forward.1} parent=1 // pred_region
      %s72 = ssub.s32 1024, 1024
      %73 = vsyncadd [#allocation9], %s72
      %s74 = sshll.u32 [#allocation8], 4
      %s75 = int_to_ptr.vmem [resolvable:$true] %s74
      %80 = dma.hbm_to_vmem [thread:$0]  %s7, 1024, %s75, [#allocation9], 64, 64, 4
    $region33: #{forward.1} parent=1 // pred_fallthru
      _
    // Predicated region
    $region34: #{forward.1} parent=1 // pred_check
      _
    $region35: #{forward.1} parent=1 // pred_check_branch
      %82 = sbr.rel (0) target = $region37
    $region36: #{forward.1} parent=1 // pred_region
      _
    $region37: #{forward.1} parent=1 // pred_fallthru
      _
    // Predicated region
    $region38: #{forward.1} parent=1 // pred_check
      _
    $region39: #{forward.1} parent=1 // pred_check_branch
      %84 = sbr.rel (0) target = $region41
    $region40: #{forward.1} parent=1 // pred_region
      %s86 = ssub.s32 1024, 1024
      %87 = vsyncadd [#allocation9], %s86
      %s88 = sshll.u32 [#allocation10], 4
      %s89 = int_to_ptr.vmem [resolvable:$true] %s88
      %94 = dma.hbm_to_vmem [thread:$0]  %s9, 1024, %s89, [#allocation9], 64, 64, 4
    $region41: #{forward.1} parent=1 // pred_fallthru
      _
    // Predicated region
    $region42: #{forward.1} parent=1 // pred_check
      _
    $region43: #{forward.1} parent=1 // pred_check_branch
      %96 = sbr.rel (0) target = $region45
    $region44: #{forward.1} parent=1 // pred_region
      _
    $region45: #{forward.1} parent=1 // pred_fallthru
      _
    // Predicated region
    $region46: #{forward.1} parent=1 // pred_check
      _
    $region47: #{forward.1} parent=1 // pred_check_branch
      %98 = sbr.rel (0) target = $region49
    $region48: #{forward.1} parent=1 // pred_region
      _
    $region49: #{forward.1} parent=1 // pred_fallthru
      _
    // Predicated region
    $region50: #{forward.1} parent=1 // pred_check
      _
    $region51: #{forward.1} parent=1 // pred_check_branch
      %100 = sbr.rel (0) target = $region53
    $region52: #{forward.1} parent=1 // pred_region
      _
    $region53: #{forward.1} parent=1 // pred_fallthru
      _
    // Predicated region
    $region54: #{forward.1} parent=1 // pred_check
      _
    $region55: #{forward.1} parent=1 // pred_check_branch
      %102 = sbr.rel (0) target = $region57
    $region56: #{forward.1} parent=1 // pred_region
      %103 = dma.done [#allocation3], 1024
    $region57: #{forward.1} parent=1 // pred_fallthru
      _
    // Predicated region
    $region58: #{forward.1} parent=1 // pred_check
      _
    $region59: #{forward.1} parent=1 // pred_check_branch
      %105 = sbr.rel (0) target = $region61
    $region60: #{forward.1} parent=1 // pred_region
      %106 = dma.done [#allocation6], 1024
    $region61: #{forward.1} parent=1 // pred_fallthru
      _
    // Predicated region
    $region62: #{forward.1} parent=1 // pred_check
      _
    $region63: #{forward.1} parent=1 // pred_check_branch
      %108 = sbr.rel (0) target = $region65
    $region64: #{forward.1} parent=1 // pred_region
      %109 = dma.done [#allocation6], 1024
    $region65: #{forward.1} parent=1 // pred_fallthru
      _
    // Predicated region
    $region66: #{forward.1} parent=1 // pred_check
      _
    $region67: #{forward.1} parent=1 // pred_check_branch
      %111 = sbr.rel (0) target = $region69
    $region68: #{forward.1} parent=1 // pred_region
      %112 = dma.done [#allocation9], 1024
    $region69: #{forward.1} parent=1 // pred_fallthru
      _
    // Predicated region
    $region70: #{forward.1} parent=1 // pred_check
      _
    $region71: #{forward.1} parent=1 // pred_check_branch
      %114 = sbr.rel (0) target = $region73
    $region72: #{forward.1} parent=1 // pred_region
      %115 = dma.done [#allocation9], 1024
    $region73: #{forward.1} parent=1 // pred_fallthru
      _
    %v117 = vld [vmem:[%s0] sm:$0xf]
    %v118 = vld [vmem:[%s0 + $0x4] sm:$0xf]
    %v119 = vld [vmem:[#allocation2] sm:$0xf]
    %v120 = vld [vmem:[#allocation2 + $0x4] sm:$0xf]
    %v121 = vld [vmem:[#allocation2 + $0x8] sm:$0xf]
    %v122 = vld [vmem:[#allocation2 + $0xc] sm:$0xf]
    %v123 = vld [vmem:[#allocation2 + $0x10] sm:$0xf]
    %v124 = vld [vmem:[#allocation2 + $0x14] sm:$0xf]
    %v125 = vld [vmem:[#allocation2 + $0x18] sm:$0xf]
    %v126 = vld [vmem:[#allocation2 + $0x1c] sm:$0xf]
    %v127 = vld [vmem:[#allocation2 + $0x20] sm:$0xf]
    %v128 = vld [vmem:[#allocation2 + $0x24] sm:$0xf]
    %v129 = vld [vmem:[#allocation2 + $0x28] sm:$0xf]
    %v130 = vld [vmem:[#allocation2 + $0x2c] sm:$0xf]
    %v131 = vld [vmem:[#allocation2 + $0x30] sm:$0xf]
    %v132 = vld [vmem:[#allocation2 + $0x34] sm:$0xf]
    %v133 = vld [vmem:[#allocation2 + $0x38] sm:$0xf]
    %v134 = vld [vmem:[#allocation2 + $0x3c] sm:$0xf]
    %v135 = vld [vmem:[%s2] sm:$0x1]
    %v137 = vlaneseq
    %v138 = vshrl.u32 %v137, 7
    %v139 = vsub.s32 0, %v138
    %v140 = vrot.slane %v135, %v139
    %v144 = vunpack.c.l.b16 %v117
    %v145 = vunpack.c.l.b16 %v118
    %v146 = vpack.c.b16 %v145, %v144
    %v164 = vunpack.c.l.b16 %v119
    %v165 = vunpack.c.l.b16 %v120
    %v166 = vunpack.c.l.b16 %v121
    %v167 = vunpack.c.l.b16 %v122
    %v168 = vunpack.c.l.b16 %v123
    %v169 = vunpack.c.l.b16 %v124
    %v170 = vunpack.c.l.b16 %v125
    %v171 = vunpack.c.l.b16 %v126
    %v172 = vunpack.c.l.b16 %v127
    %v173 = vunpack.c.l.b16 %v128
    %v174 = vunpack.c.l.b16 %v129
    %v175 = vunpack.c.l.b16 %v130
    %v176 = vunpack.c.l.b16 %v131
    %v177 = vunpack.c.l.b16 %v132
    %v178 = vunpack.c.l.b16 %v133
    %v179 = vunpack.c.l.b16 %v134
    %v180 = vpack.c.b16 %v165, %v164
    %v181 = vpack.c.b16 %v167, %v166
    %v182 = vpack.c.b16 %v169, %v168
    %v183 = vpack.c.b16 %v171, %v170
    %v184 = vpack.c.b16 %v173, %v172
    %v185 = vpack.c.b16 %v175, %v174
    %v186 = vpack.c.b16 %v177, %v176
    %v187 = vpack.c.b16 %v179, %v178
    %196 = vmatprep.subr.bf16.mxu0 0
    %197 = vmatpush1.bf16.msra.mxu0 %v180
    %198 = vmatprep.subr.bf16.mxu0 0
    %199 = vmatpush1.bf16.msra.mxu0 %v181
    %200 = vmatprep.subr.bf16.mxu0 0
    %201 = vmatpush1.bf16.msra.mxu0 %v182
    %202 = vmatprep.subr.bf16.mxu0 0
    %203 = vmatpush1.bf16.msra.mxu0 %v183
    %204 = vmatprep.subr.bf16.mxu0 0
    %205 = vmatpush1.bf16.msra.mxu0 %v184
    %206 = vmatprep.subr.bf16.mxu0 0
    %207 = vmatpush1.bf16.msra.mxu0 %v185
    %208 = vmatprep.subr.bf16.mxu0 0
    %209 = vmatpush1.bf16.msra.mxu0 %v186
    %210 = vmatprep.subr.bf16.mxu0 0
    %211 = vmatpush1.bf16.msra.mxu0 %v187
    %212 = vmatprep.subr.bf16.mxu0 0
    %213 = vmatpush1.bf16.msra.mxu0 0
    %214 = vmatprep.subr.bf16.mxu0 0
    %215 = vmatpush1.bf16.msra.mxu0 0
    %216 = vmatprep.subr.bf16.mxu0 0
    %217 = vmatpush1.bf16.msra.mxu0 0
    %218 = vmatprep.subr.bf16.mxu0 0
    %219 = vmatpush1.bf16.msra.mxu0 0
    %220 = vmatprep.subr.bf16.mxu0 0
    %221 = vmatpush1.bf16.msra.mxu0 0
    %222 = vmatprep.subr.bf16.mxu0 0
    %223 = vmatpush1.bf16.msra.mxu0 0
    %224 = vmatprep.subr.bf16.mxu0 0
    %225 = vmatpush1.bf16.msra.mxu0 0
    %226 = vmatprep.subr.bf16.mxu0 0
    %227 = vmatpush1.bf16.msra.mxu0 0
    %228 = vmatprep.mubr.bf16.mxu0 0
    %229 = vmatmul.mubr.bf16.gmra.mrb[0].mxu0 %v146
    %v230 = vpop.f32.mrb[0].mxu0
    %v231 = vadd.f32 %v140, %v230
    %v232 = vpop.f32.mrb[0].mxu0
    %v233 = vpop.f32.mrb[0].mxu0
    %v234 = vadd.f32 %v140, %v233
    %v235 = vpop.f32.mrb[0].mxu0
    %236 = vdwg.mxu0
    %v237 = vmax.f32 %v231, 0.0
    %v238 = vmax.f32 %v234, 0.0
    %v239 = vpack.c.bf16 %v238, %v237
    %v240 = vld [vmem:[#allocation5] sm:$0xf]
    %v241 = vld [vmem:[#allocation5 + $0x4] sm:$0xf]
    %v242 = vld [vmem:[#allocation5 + $0x8] sm:$0xf]
    %v243 = vld [vmem:[#allocation5 + $0xc] sm:$0xf]
    %v244 = vld [vmem:[#allocation5 + $0x10] sm:$0xf]
    %v245 = vld [vmem:[#allocation5 + $0x14] sm:$0xf]
    %v246 = vld [vmem:[#allocation5 + $0x18] sm:$0xf]
    %v247 = vld [vmem:[#allocation5 + $0x1c] sm:$0xf]
    %v248 = vld [vmem:[#allocation5 + $0x20] sm:$0xf]
    %v249 = vld [vmem:[#allocation5 + $0x24] sm:$0xf]
    %v250 = vld [vmem:[#allocation5 + $0x28] sm:$0xf]
    %v251 = vld [vmem:[#allocation5 + $0x2c] sm:$0xf]
    %v252 = vld [vmem:[#allocation5 + $0x30] sm:$0xf]
    %v253 = vld [vmem:[#allocation5 + $0x34] sm:$0xf]
    %v254 = vld [vmem:[#allocation5 + $0x38] sm:$0xf]
    %v255 = vld [vmem:[#allocation5 + $0x3c] sm:$0xf]
    %v256 = vld [vmem:[%s4] sm:$0x1]
    %v258 = vlaneseq
    %v259 = vshrl.u32 %v258, 7
    %v260 = vsub.s32 0, %v259
    %v261 = vrot.slane %v256, %v260
    %v279 = vunpack.c.l.b16 %v240
    %v280 = vunpack.c.l.b16 %v241
    %v281 = vunpack.c.l.b16 %v242
    %v282 = vunpack.c.l.b16 %v243
    %v283 = vunpack.c.l.b16 %v244
    %v284 = vunpack.c.l.b16 %v245
    %v285 = vunpack.c.l.b16 %v246
    %v286 = vunpack.c.l.b16 %v247
    %v287 = vunpack.c.l.b16 %v248
    %v288 = vunpack.c.l.b16 %v249
    %v289 = vunpack.c.l.b16 %v250
    %v290 = vunpack.c.l.b16 %v251
    %v291 = vunpack.c.l.b16 %v252
    %v292 = vunpack.c.l.b16 %v253
    %v293 = vunpack.c.l.b16 %v254
    %v294 = vunpack.c.l.b16 %v255
    %v295 = vpack.c.b16 %v280, %v279
    %v296 = vpack.c.b16 %v282, %v281
    %v297 = vpack.c.b16 %v284, %v283
    %v298 = vpack.c.b16 %v286, %v285
    %v299 = vpack.c.b16 %v288, %v287
    %v300 = vpack.c.b16 %v290, %v289
    %v301 = vpack.c.b16 %v292, %v291
    %v302 = vpack.c.b16 %v294, %v293
    %311 = vmatprep.subr.bf16.mxu0 0
    %312 = vmatpush1.bf16.msra.mxu0 %v295
    %313 = vmatprep.subr.bf16.mxu0 0
    %314 = vmatpush1.bf16.msra.mxu0 %v296
    %315 = vmatprep.subr.bf16.mxu0 0
    %316 = vmatpush1.bf16.msra.mxu0 %v297
    %317 = vmatprep.subr.bf16.mxu0 0
    %318 = vmatpush1.bf16.msra.mxu0 %v298
    %319 = vmatprep.subr.bf16.mxu0 0
    %320 = vmatpush1.bf16.msra.mxu0 %v299
    %321 = vmatprep.subr.bf16.mxu0 0
    %322 = vmatpush1.bf16.msra.mxu0 %v300
    %323 = vmatprep.subr.bf16.mxu0 0
    %324 = vmatpush1.bf16.msra.mxu0 %v301
    %325 = vmatprep.subr.bf16.mxu0 0
    %326 = vmatpush1.bf16.msra.mxu0 %v302
    %327 = vmatprep.subr.bf16.mxu0 0
    %328 = vmatpush1.bf16.msra.mxu0 0
    %329 = vmatprep.subr.bf16.mxu0 0
    %330 = vmatpush1.bf16.msra.mxu0 0
    %331 = vmatprep.subr.bf16.mxu0 0
    %332 = vmatpush1.bf16.msra.mxu0 0
    %333 = vmatprep.subr.bf16.mxu0 0
    %334 = vmatpush1.bf16.msra.mxu0 0
    %335 = vmatprep.subr.bf16.mxu0 0
    %336 = vmatpush1.bf16.msra.mxu0 0
    %337 = vmatprep.subr.bf16.mxu0 0
    %338 = vmatpush1.bf16.msra.mxu0 0
    %339 = vmatprep.subr.bf16.mxu0 0
    %340 = vmatpush1.bf16.msra.mxu0 0
    %341 = vmatprep.subr.bf16.mxu0 0
    %342 = vmatpush1.bf16.msra.mxu0 0
    %343 = vmatprep.mubr.bf16.mxu0 0
    %344 = vmatmul.mubr.bf16.gmra.mrb[0].mxu0 %v239
    %v345 = vpop.f32.mrb[0].mxu0
    %v346 = vadd.f32 %v261, %v345
    %v347 = vpop.f32.mrb[0].mxu0
    %v348 = vpop.f32.mrb[0].mxu0
    %v349 = vadd.f32 %v261, %v348
    %v350 = vpop.f32.mrb[0].mxu0
    %351 = vdwg.mxu0
    %v352 = vmax.f32 %v346, 0.0
    %v353 = vmax.f32 %v349, 0.0
    %v354 = vpack.c.bf16 %v353, %v352
    %v355 = vld [vmem:[#allocation7] sm:$0xf]
    %v356 = vld [vmem:[#allocation7 + $0x4] sm:$0xf]
    %v357 = vld [vmem:[#allocation7 + $0x8] sm:$0xf]
    %v358 = vld [vmem:[#allocation7 + $0xc] sm:$0xf]
    %v359 = vld [vmem:[#allocation7 + $0x10] sm:$0xf]
    %v360 = vld [vmem:[#allocation7 + $0x14] sm:$0xf]
    %v361 = vld [vmem:[#allocation7 + $0x18] sm:$0xf]
    %v362 = vld [vmem:[#allocation7 + $0x1c] sm:$0xf]
    %v363 = vld [vmem:[#allocation7 + $0x20] sm:$0xf]
    %v364 = vld [vmem:[#allocation7 + $0x24] sm:$0xf]
    %v365 = vld [vmem:[#allocation7 + $0x28] sm:$0xf]
    %v366 = vld [vmem:[#allocation7 + $0x2c] sm:$0xf]
    %v367 = vld [vmem:[#allocation7 + $0x30] sm:$0xf]
    %v368 = vld [vmem:[#allocation7 + $0x34] sm:$0xf]
    %v369 = vld [vmem:[#allocation7 + $0x38] sm:$0xf]
    %v370 = vld [vmem:[#allocation7 + $0x3c] sm:$0xf]
    %v371 = vld [vmem:[%s6] sm:$0x1]
    %v373 = vlaneseq
    %v374 = vshrl.u32 %v373, 7
    %v375 = vsub.s32 0, %v374
    %v376 = vrot.slane %v371, %v375
    %v394 = vunpack.c.l.b16 %v355
    %v395 = vunpack.c.l.b16 %v356
    %v396 = vunpack.c.l.b16 %v357
    %v397 = vunpack.c.l.b16 %v358
    %v398 = vunpack.c.l.b16 %v359
    %v399 = vunpack.c.l.b16 %v360
    %v400 = vunpack.c.l.b16 %v361
    %v401 = vunpack.c.l.b16 %v362
    %v402 = vunpack.c.l.b16 %v363
    %v403 = vunpack.c.l.b16 %v364
    %v404 = vunpack.c.l.b16 %v365
    %v405 = vunpack.c.l.b16 %v366
    %v406 = vunpack.c.l.b16 %v367
    %v407 = vunpack.c.l.b16 %v368
    %v408 = vunpack.c.l.b16 %v369
    %v409 = vunpack.c.l.b16 %v370
    %v410 = vpack.c.b16 %v395, %v394
    %v411 = vpack.c.b16 %v397, %v396
    %v412 = vpack.c.b16 %v399, %v398
    %v413 = vpack.c.b16 %v401, %v400
    %v414 = vpack.c.b16 %v403, %v402
    %v415 = vpack.c.b16 %v405, %v404
    %v416 = vpack.c.b16 %v407, %v406
    %v417 = vpack.c.b16 %v409, %v408
    %426 = vmatprep.subr.bf16.mxu0 0
    %427 = vmatpush1.bf16.msra.mxu0 %v410
    %428 = vmatprep.subr.bf16.mxu0 0
    %429 = vmatpush1.bf16.msra.mxu0 %v411
    %430 = vmatprep.subr.bf16.mxu0 0
    %431 = vmatpush1.bf16.msra.mxu0 %v412
    %432 = vmatprep.subr.bf16.mxu0 0
    %433 = vmatpush1.bf16.msra.mxu0 %v413
    %434 = vmatprep.subr.bf16.mxu0 0
    %435 = vmatpush1.bf16.msra.mxu0 %v414
    %436 = vmatprep.subr.bf16.mxu0 0
    %437 = vmatpush1.bf16.msra.mxu0 %v415
    %438 = vmatprep.subr.bf16.mxu0 0
    %439 = vmatpush1.bf16.msra.mxu0 %v416
    %440 = vmatprep.subr.bf16.mxu0 0
    %441 = vmatpush1.bf16.msra.mxu0 %v417
    %442 = vmatprep.subr.bf16.mxu0 0
    %443 = vmatpush1.bf16.msra.mxu0 0
    %444 = vmatprep.subr.bf16.mxu0 0
    %445 = vmatpush1.bf16.msra.mxu0 0
    %446 = vmatprep.subr.bf16.mxu0 0
    %447 = vmatpush1.bf16.msra.mxu0 0
    %448 = vmatprep.subr.bf16.mxu0 0
    %449 = vmatpush1.bf16.msra.mxu0 0
    %450 = vmatprep.subr.bf16.mxu0 0
    %451 = vmatpush1.bf16.msra.mxu0 0
    %452 = vmatprep.subr.bf16.mxu0 0
    %453 = vmatpush1.bf16.msra.mxu0 0
    %454 = vmatprep.subr.bf16.mxu0 0
    %455 = vmatpush1.bf16.msra.mxu0 0
    %456 = vmatprep.subr.bf16.mxu0 0
    %457 = vmatpush1.bf16.msra.mxu0 0
    %458 = vmatprep.mubr.bf16.mxu0 0
    %459 = vmatmul.mubr.bf16.gmra.mrb[0].mxu0 %v354
    %v460 = vpop.f32.mrb[0].mxu0
    %v461 = vadd.f32 %v376, %v460
    %v462 = vpop.f32.mrb[0].mxu0
    %v463 = vpop.f32.mrb[0].mxu0
    %v464 = vadd.f32 %v376, %v463
    %v465 = vpop.f32.mrb[0].mxu0
    %466 = vdwg.mxu0
    %v467 = vpack.c.bf16 %v464, %v461
    %v468 = vld [vmem:[#allocation8] sm:$0xf]
    %v469 = vld [vmem:[#allocation8 + $0x4] sm:$0xf]
    %v470 = vld [vmem:[#allocation8 + $0x8] sm:$0xf]
    %v471 = vld [vmem:[#allocation8 + $0xc] sm:$0xf]
    %v472 = vld [vmem:[#allocation8 + $0x10] sm:$0xf]
    %v473 = vld [vmem:[#allocation8 + $0x14] sm:$0xf]
    %v474 = vld [vmem:[#allocation8 + $0x18] sm:$0xf]
    %v475 = vld [vmem:[#allocation8 + $0x1c] sm:$0xf]
    %v476 = vld [vmem:[#allocation8 + $0x20] sm:$0xf]
    %v477 = vld [vmem:[#allocation8 + $0x24] sm:$0xf]
    %v478 = vld [vmem:[#allocation8 + $0x28] sm:$0xf]
    %v479 = vld [vmem:[#allocation8 + $0x2c] sm:$0xf]
    %v480 = vld [vmem:[#allocation8 + $0x30] sm:$0xf]
    %v481 = vld [vmem:[#allocation8 + $0x34] sm:$0xf]
    %v482 = vld [vmem:[#allocation8 + $0x38] sm:$0xf]
    %v483 = vld [vmem:[#allocation8 + $0x3c] sm:$0xf]
    %v484 = vld [vmem:[%s8] sm:$0x1]
    %v486 = vlaneseq
    %v487 = vshrl.u32 %v486, 7
    %v488 = vsub.s32 0, %v487
    %v489 = vrot.slane %v484, %v488
    %v507 = vunpack.c.l.b16 %v468
    %v508 = vunpack.c.l.b16 %v469
    %v509 = vunpack.c.l.b16 %v470
    %v510 = vunpack.c.l.b16 %v471
    %v511 = vunpack.c.l.b16 %v472
    %v512 = vunpack.c.l.b16 %v473
    %v513 = vunpack.c.l.b16 %v474
    %v514 = vunpack.c.l.b16 %v475
    %v515 = vunpack.c.l.b16 %v476
    %v516 = vunpack.c.l.b16 %v477
    %v517 = vunpack.c.l.b16 %v478
    %v518 = vunpack.c.l.b16 %v479
    %v519 = vunpack.c.l.b16 %v480
    %v520 = vunpack.c.l.b16 %v481
    %v521 = vunpack.c.l.b16 %v482
    %v522 = vunpack.c.l.b16 %v483
    %v523 = vpack.c.b16 %v508, %v507
    %v524 = vpack.c.b16 %v510, %v509
    %v525 = vpack.c.b16 %v512, %v511
    %v526 = vpack.c.b16 %v514, %v513
    %v527 = vpack.c.b16 %v516, %v515
    %v528 = vpack.c.b16 %v518, %v517
    %v529 = vpack.c.b16 %v520, %v519
    %v530 = vpack.c.b16 %v522, %v521
    %539 = vmatprep.subr.bf16.mxu0 0
    %540 = vmatpush1.bf16.msra.mxu0 %v523
    %541 = vmatprep.subr.bf16.mxu0 0
    %542 = vmatpush1.bf16.msra.mxu0 %v524
    %543 = vmatprep.subr.bf16.mxu0 0
    %544 = vmatpush1.bf16.msra.mxu0 %v525
    %545 = vmatprep.subr.bf16.mxu0 0
    %546 = vmatpush1.bf16.msra.mxu0 %v526
    %547 = vmatprep.subr.bf16.mxu0 0
    %548 = vmatpush1.bf16.msra.mxu0 %v527
    %549 = vmatprep.subr.bf16.mxu0 0
    %550 = vmatpush1.bf16.msra.mxu0 %v528
    %551 = vmatprep.subr.bf16.mxu0 0
    %552 = vmatpush1.bf16.msra.mxu0 %v529
    %553 = vmatprep.subr.bf16.mxu0 0
    %554 = vmatpush1.bf16.msra.mxu0 %v530
    %555 = vmatprep.subr.bf16.mxu0 0
    %556 = vmatpush1.bf16.msra.mxu0 0
    %557 = vmatprep.subr.bf16.mxu0 0
    %558 = vmatpush1.bf16.msra.mxu0 0
    %559 = vmatprep.subr.bf16.mxu0 0
    %560 = vmatpush1.bf16.msra.mxu0 0
    %561 = vmatprep.subr.bf16.mxu0 0
    %562 = vmatpush1.bf16.msra.mxu0 0
    %563 = vmatprep.subr.bf16.mxu0 0
    %564 = vmatpush1.bf16.msra.mxu0 0
    %565 = vmatprep.subr.bf16.mxu0 0
    %566 = vmatpush1.bf16.msra.mxu0 0
    %567 = vmatprep.subr.bf16.mxu0 0
    %568 = vmatpush1.bf16.msra.mxu0 0
    %569 = vmatprep.subr.bf16.mxu0 0
    %570 = vmatpush1.bf16.msra.mxu0 0
    %571 = vmatprep.mubr.bf16.mxu0 0
    %572 = vmatmul.mubr.bf16.gmra.mrb[0].mxu0 %v467
    %v573 = vpop.f32.mrb[0].mxu0
    %v574 = vadd.f32 %v489, %v573
    %v575 = vpop.f32.mrb[0].mxu0
    %v576 = vpop.f32.mrb[0].mxu0
    %v577 = vadd.f32 %v489, %v576
    %v578 = vpop.f32.mrb[0].mxu0
    %579 = vdwg.mxu0
    %v580 = vmax.f32 %v574, 0.0
    %v581 = vmax.f32 %v577, 0.0
    %v582 = vpack.c.bf16 %v581, %v580
    %v583 = vld [vmem:[#allocation10] sm:$0xf]
    %v584 = vld [vmem:[#allocation10 + $0x4] sm:$0xf]
    %v585 = vld [vmem:[#allocation10 + $0x8] sm:$0xf]
    %v586 = vld [vmem:[#allocation10 + $0xc] sm:$0xf]
    %v587 = vld [vmem:[#allocation10 + $0x10] sm:$0xf]
    %v588 = vld [vmem:[#allocation10 + $0x14] sm:$0xf]
    %v589 = vld [vmem:[#allocation10 + $0x18] sm:$0xf]
    %v590 = vld [vmem:[#allocation10 + $0x1c] sm:$0xf]
    %v591 = vld [vmem:[#allocation10 + $0x20] sm:$0xf]
    %v592 = vld [vmem:[#allocation10 + $0x24] sm:$0xf]
    %v593 = vld [vmem:[#allocation10 + $0x28] sm:$0xf]
    %v594 = vld [vmem:[#allocation10 + $0x2c] sm:$0xf]
    %v595 = vld [vmem:[#allocation10 + $0x30] sm:$0xf]
    %v596 = vld [vmem:[#allocation10 + $0x34] sm:$0xf]
    %v597 = vld [vmem:[#allocation10 + $0x38] sm:$0xf]
    %v598 = vld [vmem:[#allocation10 + $0x3c] sm:$0xf]
    %v599 = vld [vmem:[%s10] sm:$0x1]
    %v601 = vlaneseq
    %v602 = vshrl.u32 %v601, 7
    %v603 = vsub.s32 0, %v602
    %v604 = vrot.slane %v599, %v603
    %v622 = vunpack.c.l.b16 %v583
    %v623 = vunpack.c.l.b16 %v584
    %v624 = vunpack.c.l.b16 %v585
    %v625 = vunpack.c.l.b16 %v586
    %v626 = vunpack.c.l.b16 %v587
    %v627 = vunpack.c.l.b16 %v588
    %v628 = vunpack.c.l.b16 %v589
    %v629 = vunpack.c.l.b16 %v590
    %v630 = vunpack.c.l.b16 %v591
    %v631 = vunpack.c.l.b16 %v592
    %v632 = vunpack.c.l.b16 %v593
    %v633 = vunpack.c.l.b16 %v594
    %v634 = vunpack.c.l.b16 %v595
    %v635 = vunpack.c.l.b16 %v596
    %v636 = vunpack.c.l.b16 %v597
    %v637 = vunpack.c.l.b16 %v598
    %v638 = vpack.c.b16 %v623, %v622
    %v639 = vpack.c.b16 %v625, %v624
    %v640 = vpack.c.b16 %v627, %v626
    %v641 = vpack.c.b16 %v629, %v628
    %v642 = vpack.c.b16 %v631, %v630
    %v643 = vpack.c.b16 %v633, %v632
    %v644 = vpack.c.b16 %v635, %v634
    %v645 = vpack.c.b16 %v637, %v636
    %654 = vmatprep.subr.bf16.mxu0 0
    %655 = vmatpush1.bf16.msra.mxu0 %v638
    %656 = vmatprep.subr.bf16.mxu0 0
    %657 = vmatpush1.bf16.msra.mxu0 %v639
    %658 = vmatprep.subr.bf16.mxu0 0
    %659 = vmatpush1.bf16.msra.mxu0 %v640
    %660 = vmatprep.subr.bf16.mxu0 0
    %661 = vmatpush1.bf16.msra.mxu0 %v641
    %662 = vmatprep.subr.bf16.mxu0 0
    %663 = vmatpush1.bf16.msra.mxu0 %v642
    %664 = vmatprep.subr.bf16.mxu0 0
    %665 = vmatpush1.bf16.msra.mxu0 %v643
    %666 = vmatprep.subr.bf16.mxu0 0
    %667 = vmatpush1.bf16.msra.mxu0 %v644
    %668 = vmatprep.subr.bf16.mxu0 0
    %669 = vmatpush1.bf16.msra.mxu0 %v645
    %670 = vmatprep.subr.bf16.mxu0 0
    %671 = vmatpush1.bf16.msra.mxu0 0
    %672 = vmatprep.subr.bf16.mxu0 0
    %673 = vmatpush1.bf16.msra.mxu0 0
    %674 = vmatprep.subr.bf16.mxu0 0
    %675 = vmatpush1.bf16.msra.mxu0 0
    %676 = vmatprep.subr.bf16.mxu0 0
    %677 = vmatpush1.bf16.msra.mxu0 0
    %678 = vmatprep.subr.bf16.mxu0 0
    %679 = vmatpush1.bf16.msra.mxu0 0
    %680 = vmatprep.subr.bf16.mxu0 0
    %681 = vmatpush1.bf16.msra.mxu0 0
    %682 = vmatprep.subr.bf16.mxu0 0
    %683 = vmatpush1.bf16.msra.mxu0 0
    %684 = vmatprep.subr.bf16.mxu0 0
    %685 = vmatpush1.bf16.msra.mxu0 0
    %686 = vmatprep.mubr.bf16.mxu0 0
    %687 = vmatmul.mubr.bf16.gmra.mrb[0].mxu0 %v582
    %v688 = vpop.f32.mrb[0].mxu0
    %v689 = vadd.f32 %v604, %v688
    %v690 = vpop.f32.mrb[0].mxu0
    %v691 = vpop.f32.mrb[0].mxu0
    %v692 = vadd.f32 %v604, %v691
    %v693 = vpop.f32.mrb[0].mxu0
    %694 = vdwg.mxu0
    %v695 = vmax.f32 %v689, 0.0
    %v696 = vmax.f32 %v692, 0.0
    %v697 = vpack.c.bf16 %v696, %v695
    %v698 = vld [vmem:[%s11] sm:$0xf]
    %v699 = vld [vmem:[%s11 + $0x4] sm:$0xf]
    %v700 = vld [vmem:[%s11 + $0x8] sm:$0xf]
    %v701 = vld [vmem:[%s11 + $0xc] sm:$0xf]
    %v702 = vld [vmem:[%s11 + $0x10] sm:$0xf]
    %v703 = vld [vmem:[%s11 + $0x14] sm:$0xf]
    %v704 = vld [vmem:[%s11 + $0x18] sm:$0xf]
    %v705 = vld [vmem:[%s11 + $0x1c] sm:$0xf]
    %v706 = vld [vmem:[%s11 + $0x20] sm:$0xf]
    %v707 = vld [vmem:[%s11 + $0x24] sm:$0xf]
    %v708 = vld [vmem:[%s11 + $0x28] sm:$0xf]
    %v709 = vld [vmem:[%s11 + $0x2c] sm:$0xf]
    %v710 = vld [vmem:[%s11 + $0x30] sm:$0xf]
    %v711 = vld [vmem:[%s11 + $0x34] sm:$0xf]
    %v712 = vld [vmem:[%s11 + $0x38] sm:$0xf]
    %v713 = vld [vmem:[%s11 + $0x3c] sm:$0xf]
    %v714 = vld [vmem:[%s12] sm:$0x1]
    %v716 = vlaneseq
    %v717 = vshrl.u32 %v716, 7
    %v718 = vsub.s32 0, %v717
    %v719 = vrot.slane %v714, %v718
    %v737 = vunpack.c.l.b16 %v698
    %v738 = vunpack.c.l.b16 %v699
    %v739 = vunpack.c.l.b16 %v700
    %v740 = vunpack.c.l.b16 %v701
    %v741 = vunpack.c.l.b16 %v702
    %v742 = vunpack.c.l.b16 %v703
    %v743 = vunpack.c.l.b16 %v704
    %v744 = vunpack.c.l.b16 %v705
    %v745 = vunpack.c.l.b16 %v706
    %v746 = vunpack.c.l.b16 %v707
    %v747 = vunpack.c.l.b16 %v708
    %v748 = vunpack.c.l.b16 %v709
    %v749 = vunpack.c.l.b16 %v710
    %v750 = vunpack.c.l.b16 %v711
    %v751 = vunpack.c.l.b16 %v712
    %v752 = vunpack.c.l.b16 %v713
    %v753 = vpack.c.b16 %v738, %v737
    %v754 = vpack.c.b16 %v740, %v739
    %v755 = vpack.c.b16 %v742, %v741
    %v756 = vpack.c.b16 %v744, %v743
    %v757 = vpack.c.b16 %v746, %v745
    %v758 = vpack.c.b16 %v748, %v747
    %v759 = vpack.c.b16 %v750, %v749
    %v760 = vpack.c.b16 %v752, %v751
    %769 = vmatprep.subr.bf16.mxu0 0
    %770 = vmatpush1.bf16.msra.mxu0 %v753
    %771 = vmatprep.subr.bf16.mxu0 0
    %772 = vmatpush1.bf16.msra.mxu0 %v754
    %773 = vmatprep.subr.bf16.mxu0 0
    %774 = vmatpush1.bf16.msra.mxu0 %v755
    %775 = vmatprep.subr.bf16.mxu0 0
    %776 = vmatpush1.bf16.msra.mxu0 %v756
    %777 = vmatprep.subr.bf16.mxu0 0
    %778 = vmatpush1.bf16.msra.mxu0 %v757
    %779 = vmatprep.subr.bf16.mxu0 0
    %780 = vmatpush1.bf16.msra.mxu0 %v758
    %781 = vmatprep.subr.bf16.mxu0 0
    %782 = vmatpush1.bf16.msra.mxu0 %v759
    %783 = vmatprep.subr.bf16.mxu0 0
    %784 = vmatpush1.bf16.msra.mxu0 %v760
    %785 = vmatprep.subr.bf16.mxu0 0
    %786 = vmatpush1.bf16.msra.mxu0 0
    %787 = vmatprep.subr.bf16.mxu0 0
    %788 = vmatpush1.bf16.msra.mxu0 0
    %789 = vmatprep.subr.bf16.mxu0 0
    %790 = vmatpush1.bf16.msra.mxu0 0
    %791 = vmatprep.subr.bf16.mxu0 0
    %792 = vmatpush1.bf16.msra.mxu0 0
    %793 = vmatprep.subr.bf16.mxu0 0
    %794 = vmatpush1.bf16.msra.mxu0 0
    %795 = vmatprep.subr.bf16.mxu0 0
    %796 = vmatpush1.bf16.msra.mxu0 0
    %797 = vmatprep.subr.bf16.mxu0 0
    %798 = vmatpush1.bf16.msra.mxu0 0
    %799 = vmatprep.subr.bf16.mxu0 0
    %800 = vmatpush1.bf16.msra.mxu0 0
    %801 = vmatprep.mubr.bf16.mxu0 0
    %802 = vmatmul.mubr.bf16.gmra.mrb[0].mxu0 %v697
    %v803 = vpop.f32.mrb[0].mxu0
    %v804 = vadd.f32 %v719, %v803
    %v805 = vpop.f32.mrb[0].mxu0
    %v806 = vpop.f32.mrb[0].mxu0
    %v807 = vadd.f32 %v719, %v806
    %v808 = vpop.f32.mrb[0].mxu0
    %809 = vdwg.mxu0
    %810 = vst [vmem:[#allocation11] sm:$0xff] %v804
    %811 = vst [vmem:[#allocation11 + $0x8] sm:$0xff] %v807
    %812 = vst [vmem:[#allocation12] sm:$0xff] %v461
    %813 = vst [vmem:[#allocation12 + $0x8] sm:$0xff] %v464
    // Predicated region
    $region74: #{forward.1} parent=1 // pred_check
      _
    $region75: #{forward.1} parent=1 // pred_check_branch
      %815 = sbr.rel (0) target = $region77
    $region76: #{forward.1} parent=1 // pred_region
      %s817 = ssub.s32 256, 256
      %818 = vsyncadd [#allocation4], %s817
      %s819 = sshll.u32 [#allocation11], 4
      %s820 = int_to_ptr.vmem [resolvable:$true] %s819
      %825 = dma.vmem_to_hbm [thread:$0]  %s820, 256, %s13, [#allocation4], 128, 128, 8
    $region77: #{forward.1} parent=1 // pred_fallthru
      _
    // Predicated region
    $region78: #{forward.1} parent=1 // pred_check
      _
    $region79: #{forward.1} parent=1 // pred_check_branch
      %827 = sbr.rel (0) target = $region81
    $region80: #{forward.1} parent=1 // pred_region
      %s829 = ssub.s32 256, 256
      %830 = vsyncadd [#allocation13], %s829
      %s831 = sshll.u32 [#allocation12], 4
      %s832 = int_to_ptr.vmem [resolvable:$true] %s831
      %837 = dma.vmem_to_hbm [thread:$0]  %s832, 256, %s14, [#allocation13], 128, 128, 8
    $region81: #{forward.1} parent=1 // pred_fallthru
      _
    // Predicated region
    $region82: #{forward.1} parent=1 // pred_check
      _
    $region83: #{forward.1} parent=1 // pred_check_branch
      %839 = sbr.rel (0) target = $region85
    $region84: #{forward.1} parent=1 // pred_region
      %840 = dma.done [#allocation4], 256
    $region85: #{forward.1} parent=1 // pred_fallthru
      _
    // Predicated region
    $region86: #{forward.1} parent=1 // pred_check
      _
    $region87: #{forward.1} parent=1 // pred_check_branch
      %842 = sbr.rel (0) target = $region89
    $region88: #{forward.1} parent=1 // pred_region
      %843 = dma.done [#allocation13], 256
    $region89: #{forward.1} parent=1 // pred_fallthru
      _
    %844 = vsyncpa [#allocation3], 1
    %845 = vsyncpa [#allocation6], 1
    %846 = vsyncpa [#allocation9], 1
    %847 = vsyncpa [#allocation4], 1
    %848 = vsyncpa [#allocation13], 1

</llo_original>
